<compile_context>
chip_gen: v6e
topology: v6e:2x2x1
jax: 0.10.0
libtpu: 0.0.40
codegen_flags: <defaults>
</compile_context>

<pallas_src>
import math

import jax
import jax.numpy as jnp
from jax import lax
from jax.experimental import pallas as pl
from jax.experimental.pallas import tpu as pltpu

LANE = 128


def _round_up(x, m):
    return (x + m - 1) // m * m


def _make_conv1d_kernel(c_in, c_out, kernel_size, stride, l_pad, prewindowed):
    def kernel(x_ref, w_ref, b_ref, o_ref):
        # w_ref: (C_out, K*C_in) bf16     b_ref: (C_out, 1) f32
        # o_ref: (1, C_out, L_pad) f32
        if prewindowed:
            # x_ref: (1, K*C_in, L_pad) — im2col already done by the wrapper
            # (stride > 1 case).
            rhs = x_ref[0]
        else:
            # x_ref: (1, C_in, L_in_pad). Build the fused RHS by stacking the
            # K shifted windows along the sublane axis. Ref-level contiguous
            # slices (tap offset only) — no strided lane gather, no
            # materialize-then-slice.
            taps = [x_ref[0, :, pl.ds(k, l_pad)] for k in range(kernel_size)]
            rhs = jnp.concatenate(taps, axis=0)  # (K*C_in, L_pad)

        # One MXU matmul, contraction = K*C_in, f32 accumulation.
        acc = jnp.dot(w_ref[...], rhs, preferred_element_type=jnp.float32)
        o_ref[0] = (acc + b_ref[...]).astype(o_ref.dtype)

    return kernel


def cnn_block_forward(x, weight, bias, *, stride, compute_dtype=jnp.bfloat16):
    """Conv1d(padding='valid') forward.

    x: (N, C_in, L_in) f32; weight: (C_out, C_in, K); bias: (C_out,).
    Returns (N, C_out, L_out) f32.
    """
    n, c_in, l_in = x.shape
    c_out, _, k = weight.shape
    l_out = (l_in - k) // stride + 1
    assert l_out >= 1, "input too short for this kernel_size/stride"

    # Lane-dense output: pad L_out up to a multiple of 128 lanes.
    l_pad = _round_up(l_out, LANE)
    # Input length needed so every (padded) output column has a full window.
    l_in_need = (l_pad - 1) * stride + k
    l_in_pad = _round_up(l_in_need, LANE)
    x_pad = jnp.pad(x, ((0, 0), (0, 0), (0, l_in_pad - l_in)))

    # Fuse the K taps: w_fused[co, kk*C_in + ci] = weight[co, ci, kk].
    w_fused = jnp.transpose(weight, (0, 2, 1)).reshape(c_out, k * c_in)

    # bf16 operands for the MXU; accumulation stays f32 inside the kernel.
    x_pad = x_pad.astype(compute_dtype)
    w_fused = w_fused.astype(compute_dtype)
    bias2d = bias.reshape(c_out, 1).astype(jnp.float32)

    prewindowed = stride > 1
    if prewindowed:
        # Strided window extraction done in XLA (wrapper-side im2col): a
        # strided lane slice inside the kernel would be a cross-lane gather.
        taps = [
            lax.slice(
                x_pad,
                (0, 0, kk),
                (n, c_in, kk + (l_pad - 1) * stride + 1),
                (1, 1, stride),
            )
            for kk in range(k)
        ]
        x_in = jnp.concatenate(taps, axis=1)  # (N, K*C_in, L_pad)
        x_block = (1, k * c_in, l_pad)
    else:
        x_in = x_pad  # (N, C_in, L_in_pad)
        x_block = (1, c_in, l_in_pad)

    kernel = _make_conv1d_kernel(c_in, c_out, k, stride, l_pad, prewindowed)

    flops = 2 * n * c_out * k * c_in * l_pad
    bytes_accessed = (
        x_in.size * x_in.dtype.itemsize
        + w_fused.size * w_fused.dtype.itemsize
        + bias2d.size * 4
        + n * c_out * l_pad * 4
    )

    out = pl.pallas_call(
        kernel,
        out_shape=jax.ShapeDtypeStruct((n, c_out, l_pad), jnp.float32),
        grid_spec=pl.GridSpec(
            grid=(n,),
            in_specs=[
                pl.BlockSpec(x_block, lambda b: (b, 0, 0)),
                pl.BlockSpec((c_out, k * c_in), lambda b: (0, 0)),
                pl.BlockSpec((c_out, 1), lambda b: (0, 0)),
            ],
            out_specs=pl.BlockSpec((1, c_out, l_pad), lambda b: (b, 0, 0)),
        ),
        compiler_params=pltpu.CompilerParams(
            dimension_semantics=("parallel",),
            vmem_limit_bytes=32 * 1024 * 1024,
        ),
        cost_estimate=pl.CostEstimate(
            flops=flops, transcendentals=0, bytes_accessed=bytes_accessed
        ),
    )(x_in, w_fused, bias2d)

    # Slice off lane padding; return f32 like the PyTorch module.
    return out[:, :, :l_out]


if __name__ == "__main__":
    # Module config (synthetic, deterministic): Conv1d(in_layer=4, out_layer=8,
    # kernel_size=3, stride=1, padding='valid').
    in_layer, out_layer, kernel_size, stride = 4, 8, 3, 1
    batch, seq_len = 2, 16

    key = jax.random.PRNGKey(0)
    kx, kw, kb = jax.random.split(key, 3)

    # PyTorch default Conv1d init: U(-sqrt(1/(C_in*K)), +sqrt(1/(C_in*K)))
    bound = 1.0 / math.sqrt(in_layer * kernel_size)
    weight = jax.random.uniform(
        kw, (out_layer, in_layer, kernel_size), jnp.float32, -bound, bound
    )
    bias = jax.random.uniform(kb, (out_layer,), jnp.float32, -bound, bound)
    x = jax.random.normal(kx, (batch, in_layer, seq_len), jnp.float32)

    out = cnn_block_forward(x, weight, bias, stride=stride)
    out = jax.block_until_ready(out)

    # Reference 1: same bf16-rounded operands (tight check on the kernel math).
    xb = x.astype(jnp.bfloat16).astype(jnp.float32)
    wb = weight.astype(jnp.bfloat16).astype(jnp.float32)
    ref_bf16 = lax.conv_general_dilated(
        xb, wb,
        window_strides=(stride,),
        padding="VALID",
        dimension_numbers=("NCH", "OIH", "NCH"),
    ) + bias.reshape(1, out_layer, 1)

    # Reference 2: full-f32 module semantics (loose check, bf16 operand rounding).
    ref_f32 = lax.conv_general_dilated(
        x, weight,
        window_strides=(stride,),
        padding="VALID",
        dimension_numbers=("NCH", "OIH", "NCH"),
    ) + bias.reshape(1, out_layer, 1)

    assert out.shape == ref_f32.shape, (out.shape, ref_f32.shape)
    assert jnp.allclose(out, ref_bf16, atol=1e-4, rtol=1e-4), "mismatch vs bf16 reference"
    assert jnp.allclose(out, ref_f32, atol=5e-2, rtol=5e-2), "mismatch vs f32 reference"

    print("KERNEL_OK")
</pallas_src>

<mosaic_0001>
module attributes {stable_mosaic.version = 11 : i64} {
  func.func @kernel(%arg0: i32, %arg1: memref<1x4x256xbf16, #tpu.memory_space<vmem>>, %arg2: memref<8x12xbf16, #tpu.memory_space<vmem>>, %arg3: memref<8x1xf32, #tpu.memory_space<vmem>>, %arg4: memref<1x8x128xf32, #tpu.memory_space<vmem>>) attributes {dimension_semantics = [#tpu.dimension_semantics<parallel>], iteration_bounds = array<i64: 2>, scalar_prefetch = 0 : i64, scratch_operands = 0 : i64, tpu.core_type = #tpu.core_type<tc>, window_params = [{transform_indices = @transform_0, window_bounds = array<i64: 1, 4, 256>}, {pipeline_mode = #tpu.pipeline_mode<synchronous>, transform_indices = @transform_1, window_bounds = array<i64: 8, 12>}, {pipeline_mode = #tpu.pipeline_mode<synchronous>, transform_indices = @transform_2, window_bounds = array<i64: 8, 1>}, {transform_indices = @transform_3, window_bounds = array<i64: 1, 8, 128>}]} {
    %c0 = arith.constant 0 : index
    %c0_0 = arith.constant 0 : index
    %c0_1 = arith.constant 0 : index
    %0 = vector.load %arg1[%c0, %c0_0, %c0_1] : memref<1x4x256xbf16, #tpu.memory_space<vmem>>, vector<1x4x128xbf16>
    %1 = vector.shape_cast %0 : vector<1x4x128xbf16> to vector<4x128xbf16>
    %c0_2 = arith.constant 0 : index
    %c0_3 = arith.constant 0 : index
    %c1 = arith.constant 1 : index
    %2 = vector.load %arg1[%c0_2, %c0_3, %c1] : memref<1x4x256xbf16, #tpu.memory_space<vmem>>, vector<1x4x128xbf16>
    %3 = vector.shape_cast %2 : vector<1x4x128xbf16> to vector<4x128xbf16>
    %c0_4 = arith.constant 0 : index
    %c0_5 = arith.constant 0 : index
    %c2 = arith.constant 2 : index
    %4 = vector.load %arg1[%c0_4, %c0_5, %c2] : memref<1x4x256xbf16, #tpu.memory_space<vmem>>, vector<1x4x128xbf16>
    %5 = vector.shape_cast %4 : vector<1x4x128xbf16> to vector<4x128xbf16>
    %6 = tpu.concatenate %1, %3, %5 in 0 : vector<4x128xbf16>, vector<4x128xbf16>, vector<4x128xbf16> -> vector<12x128xbf16>
    %c0_6 = arith.constant 0 : index
    %c0_7 = arith.constant 0 : index
    %7 = vector.load %arg2[%c0_6, %c0_7] : memref<8x12xbf16, #tpu.memory_space<vmem>>, vector<8x12xbf16>
    %cst = arith.constant dense<0.000000e+00> : vector<8x128xf32>
    %8 = tpu.matmul %7, %6, %cst {dimension_numbers = #tpu.dot_dimension_numbers<[1], [0], [0], [1], [0, 0, 1, 1], [], []>} : vector<8x12xbf16>, vector<12x128xbf16>, vector<8x128xf32> -> vector<8x128xf32>
    %c0_8 = arith.constant 0 : index
    %c0_9 = arith.constant 0 : index
    %9 = vector.load %arg3[%c0_8, %c0_9] : memref<8x1xf32, #tpu.memory_space<vmem>>, vector<8x1xf32>
    %10 = vector.broadcast %9 : vector<8x1xf32> to vector<8x128xf32>
    %11 = arith.addf %8, %10 : vector<8x128xf32>
    %c0_10 = arith.constant 0 : index
    %c0_11 = arith.constant 0 : index
    %c0_12 = arith.constant 0 : index
    %12 = vector.load %arg4[%c0_10, %c0_11, %c0_12] : memref<1x8x128xf32, #tpu.memory_space<vmem>>, vector<1x8x128xf32>
    %13 = vector.shape_cast %12 : vector<1x8x128xf32> to vector<8x128xf32>
    %14 = vector.shape_cast %11 : vector<8x128xf32> to vector<1x8x128xf32>
    tpu.vector_store %arg4[%c0_10, %c0_11, %c0_12], %14 {strides = array<i32>} : memref<1x8x128xf32, #tpu.memory_space<vmem>>, vector<1x8x128xf32>,
    return
  }
  func.func @transform_0(%arg0: i32) -> (i32, i32, i32) {
    %c0_i32 = arith.constant 0 : i32
    %c0_i32_0 = arith.constant 0 : i32
    %c0_i32_1 = arith.constant 0 : i32
    return %arg0, %c0_i32, %c0_i32_0 : i32, i32, i32
  }
  func.func @transform_1(%arg0: i32) -> (i32, i32) {
    %c0_i32 = arith.constant 0 : i32
    %c0_i32_0 = arith.constant 0 : i32
    %c0_i32_1 = arith.constant 0 : i32
    return %c0_i32, %c0_i32_0 : i32, i32
  }
  func.func @transform_2(%arg0: i32) -> (i32, i32) {
    %c0_i32 = arith.constant 0 : i32
    %c0_i32_0 = arith.constant 0 : i32
    %c0_i32_1 = arith.constant 0 : i32
    return %c0_i32, %c0_i32_0 : i32, i32
  }
  func.func @transform_3(%arg0: i32) -> (i32, i32, i32) {
    %c0_i32 = arith.constant 0 : i32
    %c0_i32_0 = arith.constant 0 : i32
    %c0_i32_1 = arith.constant 0 : i32
    return %arg0, %c0_i32, %c0_i32_0 : i32, i32, i32
  }
}

</mosaic_0001>

<llo_original>
// kernel: tpu_custom_call.1
$region0: #{tpu_custom_call.1}
  #allocation0 [shape = 'u32[]', space=smem, size = 0x4, offset = 0x4, fixed_abs, tag = 'smem constant byte address 0x4 - core index']
  #allocation1 [shape = 'u32[144,128]{1,0:T(1,128)}', space=vmem, size = 0x12000, scoped, tag = 'internal scratch']
  %s0 = inlined_call_operand.vmem [shape: bf16[2,4,256], index: 0, kind: input, shape index: {}]
  %s1 = inlined_call_operand.hbm [shape: bf16[8,12], index: 1, kind: input, shape index: {}]
  %s2 = inlined_call_operand.vmem [shape: f32[8,1], index: 2, kind: input, shape index: {}]
  %s3 = inlined_call_operand.hbm [shape: f32[2,8,128], index: 3, kind: output, shape index: {}]
  %s4 = sld [smem:[#allocation0]]
  $region49: #{tpu_custom_call.1} parent=0
    _
  %s6 = ssub.s32 1, %s4
  %s7 = scalar_select 0, %s6, %s4
  $region1: #{tpu_custom_call.1} parent=0
    #allocation2 [shape = 'u8[2048]{0}', space=vmem, size = 0x800, scoped, tag = 'input window, operand 1, single buffered']
    #allocation3 [shape = 's32[2]{0}', space=sflag, size = 0x8, scoped, tag = 'scoped memory for tpu_custom_call.1']
    #allocation4 [shape = 's32[2]{0}', space=sflag, size = 0x8, scoped, tag = 'scoped memory for tpu_custom_call.1']
    #allocation5 [shape = 'u8[8192]{0}', space=vmem, size = 0x2000, scoped, tag = 'output window, operand 0']
    %8 = vsyncpa [#allocation3], 0
    %9 = vsyncpa [#allocation4], 0
    %s10 = scalar_lea.sflag [#allocation4], 1
    %11 = vsyncpa %s10, 0
    loop: start=0, step=1, limit=4
    $region2: #{tpu_custom_call.1} parent=1 // loop_pre_header
      _
    $region3: #{tpu_custom_call.1} parent=1 // loop_header
      %s13 = sphi 0, %s17
      %p14 = scmp.ge.s32.totalorder %s13, 4
      %s23 = sphi 0, %s25
      %s26 = sphi 0, %s23
      %s27 = sphi 0, %s26
      %s43 = sphi 0, %s27
      %s47 = sphi 0, %s47
      %s49 = sphi 0, %s47
      %s50 = sphi 0, %s49
      %s64 = sphi 0, %s50
      %s68 = sphi 0, %s68
      %s70 = sphi 0, %s68
      %s71 = sphi 0, %s70
      %s85 = sphi 0, %s71
      %s91 = sphi 0, %s93
      %s94 = sphi 0, %s91
      %s95 = sphi 0, %s94
      %s111 = sphi 0, %s95
    $region4: #{tpu_custom_call.1} parent=1 // loop_header_branch
      %16 = sbr.rel (%p14) target = $region8
    $region5: #{tpu_custom_call.1} parent=1 // loop_body
      %s18 = ssub.s32 %s13, 1
      %s19 = ssub.s32 %s13, 2
      %s20 = sadd.s32 %s13, 1
      %s21 = ssub.s32 %s13, %s20
      %p22 = scmp.eq.s32.totalorder %s21, 0
      %s24 = sadd.s32 %s23, 1
      %s25 = scalar_select %p22, %s23, %s24
      %p28 = pneg %p22
      %p29 = scmp.eq.s32.totalorder %s13, 1
      %p30 = por %p28, %p29
      %p31 = scmp.ne.s32.totalorder %s23, %s26
      %p32 = scmp.eq.s32.totalorder %s13, 0
      %p33 = por %p31, %p32
      %p34 = scmp.ne.s32.totalorder %s23, %s26
      %p35 = scmp.eq.s32.totalorder %s18, 1
      %p36 = por %p34, %p35
      %p37 = scmp.ne.s32.totalorder %s26, %s27
      %p38 = scmp.eq.s32.totalorder %s18, 0
      %p39 = por %p37, %p38
      %p40 = scmp.ne.s32.totalorder %s26, %s27
      %p41 = scmp.eq.s32.totalorder %s19, 1
      %p42 = por %p40, %p41
      %p44 = scmp.ne.s32.totalorder %s27, %s43
      %p45 = scmp.eq.s32.totalorder %s19, 0
      %p46 = por %p44, %p45
      %s48 = sadd.s32 %s47, 1
      %p51 = scmp.eq.s32.totalorder %s13, 1
      %p52 = scmp.ne.s32.totalorder %s47, %s49
      %p53 = scmp.eq.s32.totalorder %s13, 0
      %p54 = por %p52, %p53
      %p55 = scmp.ne.s32.totalorder %s47, %s49
      %p56 = scmp.eq.s32.totalorder %s18, 1
      %p57 = por %p55, %p56
      %p58 = scmp.ne.s32.totalorder %s49, %s50
      %p59 = scmp.eq.s32.totalorder %s18, 0
      %p60 = por %p58, %p59
      %p61 = scmp.ne.s32.totalorder %s49, %s50
      %p62 = scmp.eq.s32.totalorder %s19, 1
      %p63 = por %p61, %p62
      %p65 = scmp.ne.s32.totalorder %s50, %s64
      %p66 = scmp.eq.s32.totalorder %s19, 0
      %p67 = por %p65, %p66
      %s69 = sadd.s32 %s68, 1
      %p72 = scmp.eq.s32.totalorder %s13, 1
      %p73 = scmp.ne.s32.totalorder %s68, %s70
      %p74 = scmp.eq.s32.totalorder %s13, 0
      %p75 = por %p73, %p74
      %p76 = scmp.ne.s32.totalorder %s68, %s70
      %p77 = scmp.eq.s32.totalorder %s18, 1
      %p78 = por %p76, %p77
      %p79 = scmp.ne.s32.totalorder %s70, %s71
      %p80 = scmp.eq.s32.totalorder %s18, 0
      %p81 = por %p79, %p80
      %p82 = scmp.ne.s32.totalorder %s70, %s71
      %p83 = scmp.eq.s32.totalorder %s19, 1
      %p84 = por %p82, %p83
      %p86 = scmp.ne.s32.totalorder %s71, %s85
      %p87 = scmp.eq.s32.totalorder %s19, 0
      %p88 = por %p86, %p87
      %s89 = ssub.s32 %s13, %s20
      %p90 = scmp.eq.s32.totalorder %s89, 0
      %s92 = sadd.s32 %s91, 1
      %s93 = scalar_select %p90, %s91, %s92
      %p96 = pneg %p90
      %p97 = scmp.eq.s32.totalorder %s13, 1
      %p98 = por %p96, %p97
      %p99 = scmp.ne.s32.totalorder %s91, %s94
      %p100 = scmp.eq.s32.totalorder %s13, 0
      %p101 = por %p99, %p100
      %p102 = scmp.ne.s32.totalorder %s91, %s94
      %p103 = scmp.eq.s32.totalorder %s18, 1
      %p104 = por %p102, %p103
      %p105 = scmp.ne.s32.totalorder %s94, %s95
      %p106 = scmp.eq.s32.totalorder %s18, 0
      %p107 = por %p105, %p106
      %p108 = scmp.ne.s32.totalorder %s94, %s95
      %p109 = scmp.eq.s32.totalorder %s19, 1
      %p110 = por %p108, %p109
      %p112 = scmp.ne.s32.totalorder %s95, %s111
      %p113 = scmp.eq.s32.totalorder %s19, 0
      %p114 = por %p112, %p113
      %p115 = scmp.le.s32.totalorder 1, %s13
      %p116 = scmp.lt.s32.totalorder %s13, 3
      %p117 = pnand %p115, %p116
      %p118 = pneg %p117
      // Predicated region
      $region9: #{tpu_custom_call.1} parent=5 // pred_check
        _
      $region10: #{tpu_custom_call.1} parent=5 // pred_check_branch
        %120 = sbr.rel (%p117) target = $region12
      $region11: #{tpu_custom_call.1} parent=5 // pred_region
        %s121 = ssub.s32 %s13, 1
        // Predicated region
        $region13: #{tpu_custom_call.1} parent=11 // pred_check
          %p122 = pneg %p60
        $region14: #{tpu_custom_call.1} parent=11 // pred_check_branch
          %124 = sbr.rel (%p122) target = $region16
        $region15: #{tpu_custom_call.1} parent=11 // pred_region
          %s126 = ssub.s32 64, 64
          %127 = vsyncadd [#allocation3], %s126
          %s129 = sshll.u32 [#allocation2], 4
          %s130 = int_to_ptr.vmem [resolvable:$true] %s129
          %132 = dma.hbm_to_vmem [thread:$0]  %s1, 64, %s130, [#allocation3]
        $region16: #{tpu_custom_call.1} parent=11 // pred_fallthru
          _
        // Predicated region
        $region17: #{tpu_custom_call.1} parent=11 // pred_check
          %p133 = pneg %p81
        $region18: #{tpu_custom_call.1} parent=11 // pred_check_branch
          %135 = sbr.rel (%p133) target = $region20
        $region19: #{tpu_custom_call.1} parent=11 // pred_region
          _
        $region20: #{tpu_custom_call.1} parent=11 // pred_fallthru
          _
      $region12: #{tpu_custom_call.1} parent=5 // pred_fallthru
        _
      %p136 = scmp.lt.s32.totalorder %s13, 2
      // Predicated region
      $region21: #{tpu_custom_call.1} parent=5 // pred_check
        %p137 = pneg %p136
      $region22: #{tpu_custom_call.1} parent=5 // pred_check_branch
        %139 = sbr.rel (%p137) target = $region24
      $region23: #{tpu_custom_call.1} parent=5 // pred_region
        // Predicated region
        $region25: #{tpu_custom_call.1} parent=23 // pred_check
          %p140 = pneg %p33
        $region26: #{tpu_custom_call.1} parent=23 // pred_check_branch
          %142 = sbr.rel (%p140) target = $region28
        $region27: #{tpu_custom_call.1} parent=23 // pred_region
          %p143 = scmp.lt.s32.totalorder %s13, 1
          %s144 = scalar_select %p143, %s13, 1
          %s145 = smul.addr %s144, 2
          %s146 = smul.addr %s145, 2
          %s147 = scalar_lea.vmem %s0, %s146
        $region28: #{tpu_custom_call.1} parent=23 // pred_fallthru
          _
      $region24: #{tpu_custom_call.1} parent=5 // pred_fallthru
        _
      %p148 = scmp.le.s32.totalorder 1, %s13
      %p149 = scmp.lt.s32.totalorder %s13, 3
      %p150 = pnand %p148, %p149
      %p151 = pneg %p150
      // Predicated region
      $region29: #{tpu_custom_call.1} parent=5 // pred_check
        _
      $region30: #{tpu_custom_call.1} parent=5 // pred_check_branch
        %153 = sbr.rel (%p150) target = $region32
      $region31: #{tpu_custom_call.1} parent=5 // pred_region
        %s154 = ssub.s32 %s13, 1
        // Predicated region
        $region33: #{tpu_custom_call.1} parent=31 // pred_check
          %p155 = pneg %p60
        $region34: #{tpu_custom_call.1} parent=31 // pred_check_branch
          %157 = sbr.rel (%p155) target = $region36
        $region35: #{tpu_custom_call.1} parent=31 // pred_region
          %158 = dma.done [#allocation3], 64
        $region36: #{tpu_custom_call.1} parent=31 // pred_fallthru
          _
        %p159 = scmp.lt.s32.totalorder %s18, 1
        %s160 = scalar_select %p159, %s18, 1
        %s161 = smul.addr %s160, 2
        %s162 = smul.addr %s161, 2
        %s163 = scalar_lea.vmem %s0, %s162
        %p164 = pneg %p39
        %p165 = pneg %p36
        %p166 = pneg %p60
        %p167 = pneg %p57
        %p168 = pneg %p81
        %p169 = pneg %p78
        %p170 = pneg %p107
        %p171 = pneg %p104
        %s172 = sand.u32 %s94, 1
        %s173 = scalar_lea.sflag [#allocation4], %s172
        %s174 = sand.u32 %s94, 1
        %s175 = smul.addr %s174, 8
        %s176 = scalar_lea.vmem [#allocation5], %s175
        %p177 = scmp.lt.s32.totalorder %s18, 1
        %s178 = scalar_select %p177, %s18, 1
        %s179 = smul.addr %s178, 2
        %s180 = smul.addr %s179, 2
        %s181 = scalar_lea.vmem %s0, %s180
        %v183 = vld [vmem:[%s181] sm:$0x3]
        %v184 = vld [vmem:[%s181] sm:$0xf]
        %v186 = vcombine.low %v184, %v184
        %v188 = vunpack.c.l.s4 1983009808
        %v189 = vunpack.c.0.s8 %v188
        %v190 = vlaneseq
        %v191 = vshrl.u32 %v190, 7
        %v192 = vsub.s32 %v189, %v191
        %v193 = vrot.slane %v186, %v192
        %v195 = vunpack.c.l.s4 1983009808
        %v196 = vunpack.c.0.s8 %v195
        %v197 = vlaneseq
        %v198 = vshrl.u32 %v197, 7
        %v199 = vsub.s32 %v196, %v198
        %v200 = vrot.slane %v184, %v199
        %v201 = vcombine.high %v193, %v193
        %202 = vrot.lane.b32.xlu0 %v193, 127
        %v203 = vpop.permute.xlu0 %202
        %204 = vrot.lane.b32.xlu0 %v201, 127
        %v205 = vpop.permute.xlu0 %204
        %vm206 = vcmask 1039360
        %v207 = vsel %vm206, %v203, %v205
        %v208 = vcombine.low %v200, %v200
        %209 = vrot.lane.b32.xlu0 %v208, 126
        %v210 = vpop.permute.xlu0 %209
        %211 = vrot.lane.b32.xlu0 %v200, 126
        %v212 = vpop.permute.xlu0 %211
        %vm213 = vcmask 1031168
        %v214 = vsel %vm213, %v210, %v212
        %vm215 = vcmask 1041408
        %v218 = vsel %vm215, %v183, %v207
        %vm219 = vcmask 1043456
        %v221 = vsel %vm219, %v218, %v214
        %v222 = vld [vmem:[#allocation2] sm:$0xf]
        %v223 = vld [vmem:[%s2] sm:$0xff]
        %225 = vset.pattern.permute.xlu0 0
        %226 = vperm.xlu0 %225, %v223
        %v227 = vpop.permute.xlu0 %226
        %vm229 = vcmask 97280
        %v231 = vsel %vm229, %v222, 0
        %vm233 = vcmask 1045504
        %v234 = vsel %vm233, %v221, 0
        %236 = vmatprep.subr.bf16.mxu0 0
        %237 = vmatpush1.bf16.msra.mxu0 0
        %238 = vmatprep.subr.bf16.mxu0 0
        %239 = vmatpush1.bf16.msra.mxu0 0
        %240 = vmatprep.subr.bf16.mxu0 0
        %241 = vmatpush1.bf16.msra.mxu0 0
        %242 = vmatprep.subr.bf16.mxu0 0
        %243 = vmatpush1.bf16.msra.mxu0 0
        %244 = vmatprep.subr.bf16.mxu0 0
        %245 = vmatpush1.bf16.msra.mxu0 0
        %246 = vmatprep.subr.bf16.mxu0 0
        %247 = vmatpush1.bf16.msra.mxu0 0
        %248 = vmatprep.subr.bf16.mxu0 0
        %249 = vmatpush1.bf16.msra.mxu0 0
        %250 = vmatprep.subr.bf16.mxu0 0
        %251 = vmatpush1.bf16.msra.mxu0 %v234
        %252 = vmatprep.subr.bf16.mxu0 0
        %253 = vmatpush2.bf16.msra.mxu0 0
        %254 = vmatprep.subr.bf16.mxu0 0
        %255 = vmatpush2.bf16.msra.mxu0 0
        %256 = vmatprep.subr.bf16.mxu0 0
        %257 = vmatpush2.bf16.msra.mxu0 0
        %258 = vmatprep.subr.bf16.mxu0 0
        %259 = vmatpush2.bf16.msra.mxu0 0
        %260 = vmatprep.subr.bf16.mxu0 0
        %261 = vmatpush2.bf16.msra.mxu0 0
        %262 = vmatprep.subr.bf16.mxu0 0
        %263 = vmatpush2.bf16.msra.mxu0 0
        %264 = vmatprep.subr.bf16.mxu0 0
        %265 = vmatpush2.bf16.msra.mxu0 0
        %266 = vmatprep.subr.bf16.mxu0 0
        %267 = vmatpush2.bf16.msra.mxu0 0
        %268 = vmatprep.mubr.bf16.mxu0 0
        %269 = vmatmul.mubr.bf16.gmra.mxu0 %v231
        %v270 = vpop.f32.mrf.mxu0
        %v271 = vadd.f32 %v227, %v270
        %v272 = vpop.f32.mrf.mxu0
        %v273 = vpop.f32.mrf.mxu0
        %v274 = vpop.f32.mrf.mxu0
        %275 = vdwg.mxu0
        %276 = vst [vmem:[%s176] sm:$0xff] %v271
        %s277 = sand.u32 %s94, 1
        %s278 = scalar_lea.sflag [#allocation4], %s277
        %s279 = sand.u32 %s94, 1
        %s280 = smul.addr %s279, 8
        %s281 = scalar_lea.vmem [#allocation5], %s280
        // Predicated region
        $region37: #{tpu_custom_call.1} parent=31 // pred_check
          %p282 = pneg %p104
        $region38: #{tpu_custom_call.1} parent=31 // pred_check_branch
          %284 = sbr.rel (%p282) target = $region40
        $region39: #{tpu_custom_call.1} parent=31 // pred_region
          %s286 = ssub.s32 128, 128
          %287 = vsyncadd %s278, %s286
          %s288 = smul.addr %s18, 128
          %s289 = scalar_lea.hbm %s3, %s288
          %s291 = sshll.u32 %s281, 4
          %s292 = int_to_ptr.vmem [resolvable:$true] %s291
          %294 = dma.vmem_to_hbm [thread:$0]  %s292, 128, %s289, %s278
        $region40: #{tpu_custom_call.1} parent=31 // pred_fallthru
          _
      $region32: #{tpu_custom_call.1} parent=5 // pred_fallthru
        _
      %p295 = scmp.le.s32.totalorder 2, %s13
      // Predicated region
      $region41: #{tpu_custom_call.1} parent=5 // pred_check
        %p296 = pneg %p295
      $region42: #{tpu_custom_call.1} parent=5 // pred_check_branch
        %298 = sbr.rel (%p296) target = $region44
      $region43: #{tpu_custom_call.1} parent=5 // pred_region
        %s299 = ssub.s32 %s13, 2
        // Predicated region
        $region45: #{tpu_custom_call.1} parent=43 // pred_check
          %p300 = pneg %p110
        $region46: #{tpu_custom_call.1} parent=43 // pred_check_branch
          %302 = sbr.rel (%p300) target = $region48
        $region47: #{tpu_custom_call.1} parent=43 // pred_region
          %s303 = sand.u32 %s95, 1
          %s304 = scalar_lea.sflag [#allocation4], %s303
          %s305 = sand.u32 %s95, 1
          %s306 = smul.addr %s305, 8
          %s307 = scalar_lea.vmem [#allocation5], %s306
          %308 = dma.done %s304, 128
        $region48: #{tpu_custom_call.1} parent=43 // pred_fallthru
          _
      $region44: #{tpu_custom_call.1} parent=5 // pred_fallthru
        _
    $region6: #{tpu_custom_call.1} parent=1 // loop_footer
      %s17 = sadd.s32 1, %s13
    $region7: #{tpu_custom_call.1} parent=1 // loop_footer_branch
      %12 = sbr.rel target = $region3
    $region8: #{tpu_custom_call.1} parent=1 // loop_exit
      _
    %309 = vsyncpa [#allocation3], 1
    %s310 = scalar_lea.sflag [#allocation3], 1
    %311 = vsyncpa %s310, 1
    %312 = vsyncpa [#allocation4], 1
    %s313 = scalar_lea.sflag [#allocation4], 1
    %314 = vsyncpa %s313, 1

</llo_original>
